<compile_context>
chip_gen: v5e
topology: v5e:2x2
jax: 0.10.0
libtpu: 0.0.40
codegen_flags: <defaults>
</compile_context>

<pallas_src>
import jax
import jax.numpy as jnp
from jax.experimental import pallas as pl
from jax.experimental.pallas import tpu as pltpu

_ROW_GRAIN = 8       # block row count must be a multiple of 8 (sublane tiling)
_SMALL_BATCH = 1024  # below this, skip pallas_call (launch/step overhead dominates)
_MAX_BT = 16384      # v7x 64 MiB-aware cap: ~2 KiB VMEM/row (lane-padded, double-buffered)


def _round_up(n, m):
    return ((n + m - 1) // m) * m


def _linear_kernel(x_ref, w_ref, b_ref, o_ref):
    # x_ref: (bt, K)  natural layout: batch rows on sublanes, K=22 features on lanes.
    # w_ref: (O, K)   tiny weight tile, resident in VMEM every grid step.
    # b_ref: (O,)     bias in SMEM (scalar reads).
    # o_ref: (bt, O)  output rows.
    x = x_ref[...]                                   # (bt, K) f32
    for o in range(o_ref.shape[1]):                  # O is static & tiny (1) -> unrolled
        w_row = w_ref[o:o + 1, :]                    # (1, K), broadcasts over rows (VPU)
        y = jnp.sum(x * w_row, axis=1, keepdims=True) + b_ref[o]   # XLU lane reduce
        o_ref[:, o:o + 1] = y.astype(o_ref.dtype)


def simple_net_forward(x, weight, bias, *, batch_tile=_MAX_BT, use_pallas=None):
    """Pallas equivalent of SimpleNet.forward: y = x @ weight.T + bias.

    x:      (B, in_features)             float32 (natural PyTorch layout)
    weight: (out_features, in_features)  (PyTorch nn.Linear layout)
    bias:   (out_features,)
    returns (B, out_features)
    """
    B, K = x.shape
    O, K2 = weight.shape
    assert K == K2 and bias.shape == (O,)

    if use_pallas is None:
        use_pallas = B >= _SMALL_BATCH
    if not use_pallas:
        # Small-batch fast path: plain XLA beats any kernel launch here.
        return x @ weight.T + bias

    # --- batch tile selection -------------------------------------------------
    bt = min(batch_tile, _MAX_BT, _round_up(B, _ROW_GRAIN))
    bt = max(_ROW_GRAIN, _round_up(bt, _ROW_GRAIN))
    # v7x has 2 TensorCores and the batch axis is "parallel": guarantee >= 2 grid
    # steps when the batch is big enough to split. On single-TC v5e/v6e this only
    # costs one extra ~0.35 us step; on v7x it recovers up to 2x.
    if pl.cdiv(B, bt) < 2 and B >= 2 * _SMALL_BATCH:
        bt = _round_up(pl.cdiv(B, 2), _ROW_GRAIN)

    grid = pl.cdiv(B, bt)   # final partial block is masked by Pallas (no jnp.pad pass)

    # Per-step VMEM: x block lane-padded 22->128 plus y block 1->128, both
    # double-buffered  ->  ~4 * bt * 128 * 4 bytes, plus slack for the weight tile.
    vmem_limit = 4 * bt * 128 * 4 + (4 << 20)

    return pl.pallas_call(
        _linear_kernel,
        out_shape=jax.ShapeDtypeStruct((B, O), x.dtype),
        grid=(grid,),
        in_specs=[
            pl.BlockSpec((bt, K), lambda i: (i, 0)),            # contiguous reads of x
            pl.BlockSpec((O, K), lambda i: (0, 0)),             # whole (1, 22) weight
            pl.BlockSpec(memory_space=pltpu.MemorySpace.SMEM),  # bias as scalars
        ],
        out_specs=pl.BlockSpec((bt, O), lambda i: (i, 0)),
        compiler_params=pltpu.CompilerParams(
            dimension_semantics=("parallel",),   # shard batch steps across TCs (v7x)
            vmem_limit_bytes=vmem_limit,
        ),
    )(x, weight, bias)


def init_params(key, input_size=22, output_size=1):
    # Deterministic init mimicking nn.Linear default: U(-1/sqrt(fan_in), 1/sqrt(fan_in))
    kw, kb = jax.random.split(key)
    bound = 1.0 / jnp.sqrt(jnp.float32(input_size))
    weight = jax.random.uniform(
        kw, (output_size, input_size), jnp.float32, -bound, bound
    )
    bias = jax.random.uniform(kb, (output_size,), jnp.float32, -bound, bound)
    return weight, bias


if __name__ == "__main__":
    key = jax.random.PRNGKey(0)
    k_x1, k_x2, k_p = jax.random.split(key, 3)

    input_size = 22
    output_size = 1
    weight, bias = init_params(k_p, input_size, output_size)

    # 1) Module-typical tiny batch: wrapper takes the small-batch fast path.
    x_small = jax.random.normal(k_x1, (8, input_size), jnp.float32)
    y_small = simple_net_forward(x_small, weight, bias)
    jax.block_until_ready(y_small)
    assert y_small.shape == (8, output_size)
    assert jnp.allclose(y_small, x_small @ weight.T + bias, atol=1e-5, rtol=1e-5)

    # 2) Same tiny batch, Pallas path forced (exercises the kernel at full-dim blocks).
    y_small_k = simple_net_forward(x_small, weight, bias, use_pallas=True)
    jax.block_until_ready(y_small_k)
    assert jnp.allclose(y_small_k, x_small @ weight.T + bias, atol=1e-5, rtol=1e-5)

    # 3) Larger batch: Pallas path with a >=2-step "parallel" grid.
    batch = 4096
    x_big = jax.random.normal(k_x2, (batch, input_size), jnp.float32)
    y_big = simple_net_forward(x_big, weight, bias)
    jax.block_until_ready(y_big)
    assert y_big.shape == (batch, output_size)
    assert jnp.allclose(y_big, x_big @ weight.T + bias, atol=1e-5, rtol=1e-5)

    print("KERNEL_OK")
</pallas_src>

<mosaic_0001>
module attributes {stable_mosaic.version = 11 : i64} {
  func.func @_linear_kernel(%arg0: i32, %arg1: memref<8x22xf32, #tpu.memory_space<vmem>>, %arg2: memref<1x22xf32, #tpu.memory_space<vmem>>, %arg3: memref<1xf32, #tpu.memory_space<smem>>, %arg4: memref<8x1xf32, #tpu.memory_space<vmem>>) attributes {dimension_semantics = [#tpu.dimension_semantics<parallel>], iteration_bounds = array<i64: 1>, scalar_prefetch = 0 : i64, scratch_operands = 0 : i64, tpu.core_type = #tpu.core_type<tc>, window_params = [{transform_indices = @transform_0, window_bounds = array<i64: 8, 22>}, {pipeline_mode = #tpu.pipeline_mode<synchronous>, transform_indices = @transform_1, window_bounds = array<i64: 1, 22>}, {transform_indices = @transform_2, window_bounds = array<i64: 1>}, {transform_indices = @transform_3, window_bounds = array<i64: 8, 1>}]} {
    %c0 = arith.constant 0 : index
    %c0_0 = arith.constant 0 : index
    %0 = vector.load %arg1[%c0, %c0_0] : memref<8x22xf32, #tpu.memory_space<vmem>>, vector<8x22xf32>
    %c0_1 = arith.constant 0 : index
    %c0_2 = arith.constant 0 : index
    %1 = vector.load %arg2[%c0_1, %c0_2] : memref<1x22xf32, #tpu.memory_space<vmem>>, vector<1x22xf32>
    %2 = vector.broadcast %1 : vector<1x22xf32> to vector<8x22xf32>
    %3 = arith.mulf %0, %2 : vector<8x22xf32>
    %cst = arith.constant dense<0.000000e+00> : vector<8xf32>
    %4 = vector.multi_reduction <add>, %3, %cst [1] : vector<8x22xf32> to vector<8xf32>
    %5 = vector.shape_cast %4 : vector<8xf32> to vector<8x1xf32>
    %c0_3 = arith.constant 0 : index
    %6 = memref.load %arg3[%c0_3] : memref<1xf32, #tpu.memory_space<smem>>
    %7 = vector.broadcast %6 : f32 to vector<8x1xf32>
    %8 = arith.addf %5, %7 : vector<8x1xf32>
    %c0_4 = arith.constant 0 : index
    %c0_5 = arith.constant 0 : index
    %9 = vector.load %arg4[%c0_4, %c0_5] : memref<8x1xf32, #tpu.memory_space<vmem>>, vector<8x1xf32>
    tpu.vector_store %arg4[%c0_4, %c0_5], %8 {strides = array<i32>} : memref<8x1xf32, #tpu.memory_space<vmem>>, vector<8x1xf32>,
    return
  }
  func.func @transform_0(%arg0: i32) -> (i32, i32) {
    %c0_i32 = arith.constant 0 : i32
    %c0_i32_0 = arith.constant 0 : i32
    return %arg0, %c0_i32 : i32, i32
  }
  func.func @transform_1(%arg0: i32) -> (i32, i32) {
    %c0_i32 = arith.constant 0 : i32
    %c0_i32_0 = arith.constant 0 : i32
    %c0_i32_1 = arith.constant 0 : i32
    return %c0_i32, %c0_i32_0 : i32, i32
  }
  func.func @transform_2(%arg0: i32) -> i32 {
    %c0_i32 = arith.constant 0 : i32
    %c0_i32_0 = arith.constant 0 : i32
    return %c0_i32 : i32
  }
  func.func @transform_3(%arg0: i32) -> (i32, i32) {
    %c0_i32 = arith.constant 0 : i32
    %c0_i32_0 = arith.constant 0 : i32
    return %arg0, %c0_i32 : i32, i32
  }
}

</mosaic_0001>

<llo_original>
// kernel: tpu_custom_call.1
$region0: #{tpu_custom_call.1}
  #allocation0 [shape = 'u32[]', space=smem, size = 0x4, offset = 0x4, fixed_abs, tag = 'smem constant byte address 0x4 - core index']
  #allocation1 [shape = 'u32[72,128]{1,0:T(1,128)}', space=vmem, size = 0x9000, scoped, tag = 'internal scratch']
  #allocation2 [shape = 'f32[1]{0:T(128)S(6)}', space=smem, size = 0x200, scoped, tag = 'scoped memory for tpu_custom_call.1']
  %s0 = inlined_call_operand.hbm [shape: f32[8,22], index: 0, kind: input, shape index: {}]
  %s1 = inlined_call_operand.vmem [shape: f32[1,22], index: 1, kind: input, shape index: {}]
  %s2 = inlined_call_operand.<no memory space> [shape: f32[1], index: 2, kind: input, shape index: {}]
  %s3 = inlined_call_operand.vmem [shape: f32[8,1], index: 3, kind: output, shape index: {}]
  %s4 = sld [smem:[#allocation0]]
  $region26: #{tpu_custom_call.1} parent=0
    _
  %s6 = ssub.s32 1, %s4
  %s7 = scalar_select 0, %s6, %s4
  %8 = sst [smem:[#allocation2]] %s2
  $region1: #{tpu_custom_call.1} parent=0
    #allocation3 [shape = 'u8[4096]{0}', space=vmem, size = 0x1000, scoped, tag = 'input window, operand 0, single buffered']
    #allocation4 [shape = 's32[1]{0}', space=sflag, size = 0x4, scoped, tag = 'scoped memory for tpu_custom_call.1']
    %9 = vsyncpa [#allocation4], 0
    // Predicated region
    $region2: #{tpu_custom_call.1} parent=1 // pred_check
      _
    $region3: #{tpu_custom_call.1} parent=1 // pred_check_branch
      %11 = sbr.rel (0) target = $region5
    $region4: #{tpu_custom_call.1} parent=1 // pred_region
      %13 = vsyncadd [#allocation4], 0
      %s15 = sshll.u32 %s0, 4
      %s16 = int_to_ptr.hbm [resolvable:$true] %s15
      %s17 = sshll.u32 [#allocation3], 4
      %s18 = int_to_ptr.vmem [resolvable:$true] %s17
      %20 = dma.hbm_to_vmem [thread:$0]  %s16, 128, %s18, [#allocation4]
    $region5: #{tpu_custom_call.1} parent=1 // pred_fallthru
      _
    // Predicated region
    $region6: #{tpu_custom_call.1} parent=1 // pred_check
      _
    $region7: #{tpu_custom_call.1} parent=1 // pred_check_branch
      %22 = sbr.rel (0) target = $region9
    $region8: #{tpu_custom_call.1} parent=1 // pred_region
      _
    $region9: #{tpu_custom_call.1} parent=1 // pred_fallthru
      _
    // Predicated region
    $region10: #{tpu_custom_call.1} parent=1 // pred_check
      _
    $region11: #{tpu_custom_call.1} parent=1 // pred_check_branch
      %24 = sbr.rel (0) target = $region13
    $region12: #{tpu_custom_call.1} parent=1 // pred_region
      _
    $region13: #{tpu_custom_call.1} parent=1 // pred_fallthru
      _
    // Predicated region
    $region14: #{tpu_custom_call.1} parent=1 // pred_check
      _
    $region15: #{tpu_custom_call.1} parent=1 // pred_check_branch
      %26 = sbr.rel (0) target = $region17
    $region16: #{tpu_custom_call.1} parent=1 // pred_region
      %28 = dma.done [#allocation4], 128
    $region17: #{tpu_custom_call.1} parent=1 // pred_fallthru
      _
    %v29 = vld [vmem:[#allocation3] sm:$0xff]
    %v30 = vld [vmem:[%s1] sm:$0x1]
    %v32 = vperm.slane %v30, 0
    %v34 = vmul.f32 %v29, %v32
    %vm35 = vcmask 179200
    %v36 = vsel %vm35, %v34, 0.0
    %37 = vadd.xlane.f32.xlu0 %v36
    %v38 = vpop.xlane.xlu0 %37
    %s39 = sld [smem:[#allocation2]]
    %v40 = vstv %s39
    %v41 = vadd.f32 %v38, %v40
    %vm42 = vcmask 7168
    %43 = vst.msk [vmem:[%s3] sm:$0xff] %vm42, %v41
    // Predicated region
    $region18: #{tpu_custom_call.1} parent=1 // pred_check
      _
    $region19: #{tpu_custom_call.1} parent=1 // pred_check_branch
      %45 = sbr.rel (0) target = $region21
    $region20: #{tpu_custom_call.1} parent=1 // pred_region
      _
    $region21: #{tpu_custom_call.1} parent=1 // pred_fallthru
      _
    // Predicated region
    $region22: #{tpu_custom_call.1} parent=1 // pred_check
      _
    $region23: #{tpu_custom_call.1} parent=1 // pred_check_branch
      %47 = sbr.rel (0) target = $region25
    $region24: #{tpu_custom_call.1} parent=1 // pred_region
      _
    $region25: #{tpu_custom_call.1} parent=1 // pred_fallthru
      _
    %48 = vsyncpa [#allocation4], 1

</llo_original>
